<compile_context>
chip_gen: v7x
topology: tpu7x:2x2x1
jax: 0.10.0
libtpu: 0.0.40
codegen_flags: <defaults>
</compile_context>

<pallas_src>
import functools

import jax
import jax.numpy as jnp
from jax.experimental import pallas as pl
from jax.experimental.pallas import tpu as pltpu


def _round_up(n, m):
    return ((n + m - 1) // m) * m


def _cdiv(a, b):
    return -(-a // b)


def value_mlp_kernel(xt_ref, w1_ref, b1_ref, w2_ref, b2_ref, w3_ref, b3_ref, o_ref):
    """Transposed-layout MLP: o(1,tb) = w3 . relu(W2 @ relu(W1 @ x^T + b1) + b2) + b3."""
    # In-kernel cast of the x tile to the weight dtype (no-op for f32 params);
    # this keeps the bf16 path free of a wrapper-side HBM cast pass over x.
    xt = xt_ref[...].astype(w1_ref.dtype)                       # (state_dim, tb)

    # MXU matmuls, f32 accumulation; biases are (h, 1) columns (lane-broadcast).
    h = jnp.dot(w1_ref[...], xt, preferred_element_type=jnp.float32) + b1_ref[...]
    h = jnp.maximum(h, 0.0)                                      # (h1, tb), f32 ReLU
    h = jnp.dot(w2_ref[...], h.astype(w2_ref.dtype),
                preferred_element_type=jnp.float32) + b2_ref[...]
    h = jnp.maximum(h, 0.0)                                      # (h2, tb)

    # Value head (out_features = 1): VPU multiply + XLU sublane reduction,
    # producing a lane-dense (1, tb) row directly.
    w3 = w3_ref[...].astype(jnp.float32)                         # (h2, 1)
    v = jnp.sum(h * w3, axis=0, keepdims=True) + b3_ref[0]       # (1, tb) + SMEM scalar
    o_ref[...] = v.astype(o_ref.dtype)


@functools.partial(jax.jit, static_argnames=("block_b",))
def value_forward(x, params, *, block_b=1024):
    """x: (B, state_dim) -> (B, 1) float32 via the fused Pallas kernel."""
    w1, b1, w2, b2, w3, b3 = params
    B, state_dim = x.shape
    h1 = w1.shape[0]
    h2 = w2.shape[0]

    # ---- batch tiling (lane dimension): tiles are always multiples of 128 ----
    b_lane = _round_up(B, 128)
    tb_cap = max(128, _round_up(block_b, 128))      # robust to odd caller block_b
    # Split into >=2 tiles when the batch spans >=2 lane tiles so v7x's two
    # TensorCores both get work under dimension_semantics=("parallel",).
    n_min = 2 if b_lane >= 256 else 1
    tb = min(tb_cap, _round_up(_cdiv(b_lane, n_min), 128))
    n_tiles = _cdiv(b_lane, tb)
    b_pad = n_tiles * tb

    # Transposed layout: batch is the lane axis end-to-end (lane-dense output).
    xt = x.T                                        # (state_dim, B), tiny HBM pass
    if b_pad != B:
        xt = jnp.pad(xt, ((0, 0), (0, b_pad - B)))

    # Only raise the scoped-VMEM limit for very large tiles (v5e default 16 MiB).
    vmem_limit = (40 * 1024 * 1024) if tb >= 4096 else None

    out_row = pl.pallas_call(
        value_mlp_kernel,
        out_shape=jax.ShapeDtypeStruct((1, b_pad), jnp.float32),
        grid_spec=pltpu.PrefetchScalarGridSpec(
            num_scalar_prefetch=0,
            grid=(n_tiles,),
            in_specs=[
                pl.BlockSpec((state_dim, tb), lambda i: (0, i)),   # x^T: tiled over B
                pl.BlockSpec((h1, state_dim), lambda i: (0, 0)),   # W1 (out,in): resident
                pl.BlockSpec((h1, 1), lambda i: (0, 0)),           # b1 column
                pl.BlockSpec((h2, h1), lambda i: (0, 0)),          # W2: resident
                pl.BlockSpec((h2, 1), lambda i: (0, 0)),           # b2 column
                pl.BlockSpec((h2, 1), lambda i: (0, 0)),           # w3 column (head)
                pl.BlockSpec(memory_space=pltpu.MemorySpace.SMEM), # b3 scalar in SMEM
            ],
            out_specs=pl.BlockSpec((1, tb), lambda i: (0, i)),     # lane-dense output
        ),
        compiler_params=pltpu.CompilerParams(
            dimension_semantics=("parallel",),   # independent batch tiles (v7x 2 TCs)
            vmem_limit_bytes=vmem_limit,
        ),
    )(xt, w1, b1, w2, b2, w3, b3)

    return out_row[0, :B].reshape(B, 1)


def prepare_params_bf16(params):
    """Cast the MXU operands (hidden-layer weights) to bf16 ONCE, outside the
    hot loop. Biases and the value-head weight stay f32 (VPU/EUP path)."""
    w1, b1, w2, b2, w3, b3 = params
    return (w1.astype(jnp.bfloat16), b1, w2.astype(jnp.bfloat16), b2, w3, b3)


def init_value_params(key, state_dim, hidden_size=(128, 128)):
    """nn.Linear-style init (uniform +/- 1/sqrt(fan_in)), PyTorch (out, in) weight
    layout; value-head weight *0.1, bias *0.0, exactly as in Value.__init__."""
    keys = jax.random.split(key, 6)
    dims = [state_dim] + list(hidden_size)

    def linear_init(kw, kb, fan_in, fan_out):
        bound = 1.0 / float(fan_in) ** 0.5
        w = jax.random.uniform(kw, (fan_out, fan_in), jnp.float32, -bound, bound)
        b = jax.random.uniform(kb, (fan_out, 1), jnp.float32, -bound, bound)
        return w, b

    w1, b1 = linear_init(keys[0], keys[1], dims[0], dims[1])
    w2, b2 = linear_init(keys[2], keys[3], dims[1], dims[2])
    bound = 1.0 / float(dims[2]) ** 0.5
    w3 = jax.random.uniform(keys[4], (dims[2], 1), jnp.float32, -bound, bound) * 0.1
    b3 = jnp.zeros((1,), jnp.float32)   # value_head.bias.data.mul_(0.0)
    return (w1, b1, w2, b2, w3, b3)


def value_reference(x, params):
    """Pure-JAX reference (PyTorch semantics: y = x @ W.T + b)."""
    w1, b1, w2, b2, w3, b3 = params
    h = jnp.maximum(x @ w1.T + b1.T, 0.0)
    h = jnp.maximum(h @ w2.T + b2.T, 0.0)
    return h @ w3 + b3          # w3 stored as (h2, 1) column == head weight^T


if __name__ == "__main__":
    key = jax.random.PRNGKey(0)
    k_params, k_x1, k_x2, k_x3 = jax.random.split(key, 4)

    state_dim = 32
    params = init_value_params(k_params, state_dim, hidden_size=(128, 128))

    # Small batch: single 128-lane tile, minimal padding.
    x = jax.random.normal(k_x1, (8, state_dim), jnp.float32)
    out = jax.block_until_ready(value_forward(x, params))
    ref = value_reference(x, params)
    assert out.shape == (8, 1), out.shape
    assert jnp.allclose(out, ref, atol=1e-4, rtol=1e-4), "mismatch vs reference (B=8)"

    # Ragged batch within one lane tile (B=100 -> padded to 128, single tile).
    x2 = jax.random.normal(k_x2, (100, state_dim), jnp.float32)
    out2 = jax.block_until_ready(value_forward(x2, params))
    ref2 = value_reference(x2, params)
    assert out2.shape == (100, 1), out2.shape
    assert jnp.allclose(out2, ref2, atol=1e-4, rtol=1e-4), "mismatch vs reference (B=100)"

    # Multi-tile grid + padded tail tile (B=300, block_b=128 -> 3 tiles of 128).
    x3 = jax.random.normal(k_x3, (300, state_dim), jnp.float32)
    out3 = jax.block_until_ready(value_forward(x3, params, block_b=128))
    ref3 = value_reference(x3, params)
    assert out3.shape == (300, 1), out3.shape
    assert jnp.allclose(out3, ref3, atol=1e-4, rtol=1e-4), "mismatch vs reference (B=300)"

    # bf16-MXU path: weights cast once outside the hot loop, x cast in-kernel.
    params_bf16 = prepare_params_bf16(params)
    out_bf16 = jax.block_until_ready(value_forward(x3, params_bf16, block_b=128))
    assert jnp.allclose(out_bf16, ref3, atol=5e-2, rtol=5e-2), "bf16 path diverged"

    print("KERNEL_OK")
</pallas_src>

<mosaic_0001>
module attributes {stable_mosaic.version = 11 : i64} {
  func.func @value_mlp_kernel(%arg0: i32, %arg1: memref<32x128xf32, #tpu.memory_space<vmem>>, %arg2: memref<128x32xf32, #tpu.memory_space<vmem>>, %arg3: memref<128x1xf32, #tpu.memory_space<vmem>>, %arg4: memref<128x128xf32, #tpu.memory_space<vmem>>, %arg5: memref<128x1xf32, #tpu.memory_space<vmem>>, %arg6: memref<128x1xf32, #tpu.memory_space<vmem>>, %arg7: memref<1xf32, #tpu.memory_space<smem>>, %arg8: memref<1x128xf32, #tpu.memory_space<vmem>>) attributes {dimension_semantics = [#tpu.dimension_semantics<parallel>], iteration_bounds = array<i64: 1>, scalar_prefetch = 0 : i64, scratch_operands = 0 : i64, tpu.core_type = #tpu.core_type<tc>, window_params = [{transform_indices = @transform_0, window_bounds = array<i64: 32, 128>}, {pipeline_mode = #tpu.pipeline_mode<synchronous>, transform_indices = @transform_1, window_bounds = array<i64: 128, 32>}, {pipeline_mode = #tpu.pipeline_mode<synchronous>, transform_indices = @transform_2, window_bounds = array<i64: 128, 1>}, {pipeline_mode = #tpu.pipeline_mode<synchronous>, transform_indices = @transform_3, window_bounds = array<i64: 128, 128>}, {pipeline_mode = #tpu.pipeline_mode<synchronous>, transform_indices = @transform_4, window_bounds = array<i64: 128, 1>}, {pipeline_mode = #tpu.pipeline_mode<synchronous>, transform_indices = @transform_5, window_bounds = array<i64: 128, 1>}, {transform_indices = @transform_6, window_bounds = array<i64: 1>}, {transform_indices = @transform_7, window_bounds = array<i64: 1, 128>}]} {
    %c0 = arith.constant 0 : index
    %c0_0 = arith.constant 0 : index
    %0 = vector.load %arg1[%c0, %c0_0] : memref<32x128xf32, #tpu.memory_space<vmem>>, vector<32x128xf32>
    %c0_1 = arith.constant 0 : index
    %c0_2 = arith.constant 0 : index
    %1 = vector.load %arg2[%c0_1, %c0_2] : memref<128x32xf32, #tpu.memory_space<vmem>>, vector<128x32xf32>
    %cst = arith.constant dense<0.000000e+00> : vector<128x128xf32>
    %2 = tpu.matmul %1, %0, %cst {dimension_numbers = #tpu.dot_dimension_numbers<[1], [0], [0], [1], [0, 0, 1, 1], [], []>} : vector<128x32xf32>, vector<32x128xf32>, vector<128x128xf32> -> vector<128x128xf32>
    %c0_3 = arith.constant 0 : index
    %c0_4 = arith.constant 0 : index
    %3 = vector.load %arg3[%c0_3, %c0_4] : memref<128x1xf32, #tpu.memory_space<vmem>>, vector<128x1xf32>
    %4 = vector.broadcast %3 : vector<128x1xf32> to vector<128x128xf32>
    %5 = arith.addf %2, %4 : vector<128x128xf32>
    %cst_5 = arith.constant 0.000000e+00 : f32
    %6 = vector.broadcast %cst_5 : f32 to vector<128x128xf32>
    %7 = arith.maximumf %5, %6 : vector<128x128xf32>
    %c0_6 = arith.constant 0 : index
    %c0_7 = arith.constant 0 : index
    %8 = vector.load %arg4[%c0_6, %c0_7] : memref<128x128xf32, #tpu.memory_space<vmem>>, vector<128x128xf32>
    %cst_8 = arith.constant dense<0.000000e+00> : vector<128x128xf32>
    %9 = tpu.matmul %8, %7, %cst_8 {dimension_numbers = #tpu.dot_dimension_numbers<[1], [0], [0], [1], [0, 0, 1, 1], [], []>} : vector<128x128xf32>, vector<128x128xf32>, vector<128x128xf32> -> vector<128x128xf32>
    %c0_9 = arith.constant 0 : index
    %c0_10 = arith.constant 0 : index
    %10 = vector.load %arg5[%c0_9, %c0_10] : memref<128x1xf32, #tpu.memory_space<vmem>>, vector<128x1xf32>
    %11 = vector.broadcast %10 : vector<128x1xf32> to vector<128x128xf32>
    %12 = arith.addf %9, %11 : vector<128x128xf32>
    %cst_11 = arith.constant 0.000000e+00 : f32
    %13 = vector.broadcast %cst_11 : f32 to vector<128x128xf32>
    %14 = arith.maximumf %12, %13 : vector<128x128xf32>
    %c0_12 = arith.constant 0 : index
    %c0_13 = arith.constant 0 : index
    %15 = vector.load %arg6[%c0_12, %c0_13] : memref<128x1xf32, #tpu.memory_space<vmem>>, vector<128x1xf32>
    %16 = vector.broadcast %15 : vector<128x1xf32> to vector<128x128xf32>
    %17 = arith.mulf %14, %16 : vector<128x128xf32>
    %cst_14 = arith.constant dense<0.000000e+00> : vector<128xf32>
    %18 = vector.multi_reduction <add>, %17, %cst_14 [0] : vector<128x128xf32> to vector<128xf32>
    %19 = vector.shape_cast %18 : vector<128xf32> to vector<1x128xf32>
    %c0_15 = arith.constant 0 : index
    %20 = memref.load %arg7[%c0_15] : memref<1xf32, #tpu.memory_space<smem>>
    %21 = vector.broadcast %20 : f32 to vector<1x128xf32>
    %22 = arith.addf %19, %21 : vector<1x128xf32>
    %c0_16 = arith.constant 0 : index
    %c0_17 = arith.constant 0 : index
    %23 = vector.load %arg8[%c0_16, %c0_17] : memref<1x128xf32, #tpu.memory_space<vmem>>, vector<1x128xf32>
    tpu.vector_store %arg8[%c0_16, %c0_17], %22 {strides = array<i32>} : memref<1x128xf32, #tpu.memory_space<vmem>>, vector<1x128xf32>,
    return
  }
  func.func @transform_0(%arg0: i32) -> (i32, i32) {
    %c0_i32 = arith.constant 0 : i32
    %c0_i32_0 = arith.constant 0 : i32
    return %c0_i32, %arg0 : i32, i32
  }
  func.func @transform_1(%arg0: i32) -> (i32, i32) {
    %c0_i32 = arith.constant 0 : i32
    %c0_i32_0 = arith.constant 0 : i32
    %c0_i32_1 = arith.constant 0 : i32
    return %c0_i32, %c0_i32_0 : i32, i32
  }
  func.func @transform_2(%arg0: i32) -> (i32, i32) {
    %c0_i32 = arith.constant 0 : i32
    %c0_i32_0 = arith.constant 0 : i32
    %c0_i32_1 = arith.constant 0 : i32
    return %c0_i32, %c0_i32_0 : i32, i32
  }
  func.func @transform_3(%arg0: i32) -> (i32, i32) {
    %c0_i32 = arith.constant 0 : i32
    %c0_i32_0 = arith.constant 0 : i32
    %c0_i32_1 = arith.constant 0 : i32
    return %c0_i32, %c0_i32_0 : i32, i32
  }
  func.func @transform_4(%arg0: i32) -> (i32, i32) {
    %c0_i32 = arith.constant 0 : i32
    %c0_i32_0 = arith.constant 0 : i32
    %c0_i32_1 = arith.constant 0 : i32
    return %c0_i32, %c0_i32_0 : i32, i32
  }
  func.func @transform_5(%arg0: i32) -> (i32, i32) {
    %c0_i32 = arith.constant 0 : i32
    %c0_i32_0 = arith.constant 0 : i32
    %c0_i32_1 = arith.constant 0 : i32
    return %c0_i32, %c0_i32_0 : i32, i32
  }
  func.func @transform_6(%arg0: i32) -> i32 {
    %c0_i32 = arith.constant 0 : i32
    %c0_i32_0 = arith.constant 0 : i32
    return %c0_i32 : i32
  }
  func.func @transform_7(%arg0: i32) -> (i32, i32) {
    %c0_i32 = arith.constant 0 : i32
    %c0_i32_0 = arith.constant 0 : i32
    return %c0_i32, %arg0 : i32, i32
  }
}

</mosaic_0001>

<llo_original>
// kernel: value_forward.1
$region0: #{value_forward.1}
  #allocation0 [shape = 'u32[]', space=smem, size = 0x4, offset = 0x4, fixed_abs, tag = 'smem constant byte address 0x4 - core index']
  #allocation1 [shape = 'u32[144,128]{1,0:T(1,128)}', space=vmem, size = 0x12000, scoped, tag = 'internal scratch']
  #allocation2 [shape = 'f32[1]{0:T(128)S(6)}', space=smem, size = 0x200, scoped, tag = 'scoped memory for value_forward.1']
  %s0 = inlined_call_operand.vmem [shape: f32[32,128], index: 0, kind: input, shape index: {}]
  %s1 = inlined_call_operand.vmem [shape: f32[128,32], index: 1, kind: input, shape index: {}]
  %s2 = inlined_call_operand.vmem [shape: f32[128,1], index: 2, kind: input, shape index: {}]
  %s3 = inlined_call_operand.vmem [shape: f32[128,128], index: 3, kind: input, shape index: {}]
  %s4 = inlined_call_operand.vmem [shape: f32[128,1], index: 4, kind: input, shape index: {}]
  %s5 = inlined_call_operand.vmem [shape: f32[128,1], index: 5, kind: input, shape index: {}]
  %s6 = inlined_call_operand.<no memory space> [shape: f32[1], index: 6, kind: input, shape index: {}]
  %s7 = inlined_call_operand.vmem [shape: f32[1,128], index: 7, kind: output, shape index: {}]
  %s8 = sld [smem:[#allocation0]]
  $region38: #{value_forward.1} parent=0
    _
  %s10 = ssub.s32 1, %s8
  %s11 = scalar_select 0, %s10, %s8
  %12 = sst [smem:[#allocation2]] %s6
  // Predicated region
  $region2: #{value_forward.1} parent=0 // pred_check
    _
  $region3: #{value_forward.1} parent=0 // pred_check_branch
    %14 = sbr.rel (0) target = $region5
  $region4: #{value_forward.1} parent=0 // pred_region
    _
  $region5: #{value_forward.1} parent=0 // pred_fallthru
    _
  // Predicated region
  $region6: #{value_forward.1} parent=0 // pred_check
    _
  $region7: #{value_forward.1} parent=0 // pred_check_branch
    %16 = sbr.rel (0) target = $region9
  $region8: #{value_forward.1} parent=0 // pred_region
    _
  $region9: #{value_forward.1} parent=0 // pred_fallthru
    _
  // Predicated region
  $region10: #{value_forward.1} parent=0 // pred_check
    _
  $region11: #{value_forward.1} parent=0 // pred_check_branch
    %18 = sbr.rel (0) target = $region13
  $region12: #{value_forward.1} parent=0 // pred_region
    _
  $region13: #{value_forward.1} parent=0 // pred_fallthru
    _
  // Predicated region
  $region14: #{value_forward.1} parent=0 // pred_check
    _
  $region15: #{value_forward.1} parent=0 // pred_check_branch
    %20 = sbr.rel (0) target = $region17
  $region16: #{value_forward.1} parent=0 // pred_region
    _
  $region17: #{value_forward.1} parent=0 // pred_fallthru
    _
  // Predicated region
  $region18: #{value_forward.1} parent=0 // pred_check
    _
  $region19: #{value_forward.1} parent=0 // pred_check_branch
    %22 = sbr.rel (0) target = $region21
  $region20: #{value_forward.1} parent=0 // pred_region
    _
  $region21: #{value_forward.1} parent=0 // pred_fallthru
    _
  // Predicated region
  $region22: #{value_forward.1} parent=0 // pred_check
    _
  $region23: #{value_forward.1} parent=0 // pred_check_branch
    %24 = sbr.rel (0) target = $region25
  $region24: #{value_forward.1} parent=0 // pred_region
    _
  $region25: #{value_forward.1} parent=0 // pred_fallthru
    _
  // Predicated region
  $region26: #{value_forward.1} parent=0 // pred_check
    _
  $region27: #{value_forward.1} parent=0 // pred_check_branch
    %26 = sbr.rel (0) target = $region29
  $region28: #{value_forward.1} parent=0 // pred_region
    _
  $region29: #{value_forward.1} parent=0 // pred_fallthru
    _
  %v27 = vld [vmem:[%s0] sm:$0xff]
  %v28 = vld [vmem:[%s0 + $0x8] sm:$0xff]
  %v29 = vld [vmem:[%s0 + $0x10] sm:$0xff]
  %v30 = vld [vmem:[%s0 + $0x18] sm:$0xff]
  %v31 = vld [vmem:[%s1] sm:$0xff]
  %v32 = vld [vmem:[%s1 + $0x8] sm:$0xff]
  %v33 = vld [vmem:[%s1 + $0x10] sm:$0xff]
  %v34 = vld [vmem:[%s1 + $0x18] sm:$0xff]
  %v35 = vld [vmem:[%s1 + $0x20] sm:$0xff]
  %v36 = vld [vmem:[%s1 + $0x28] sm:$0xff]
  %v37 = vld [vmem:[%s1 + $0x30] sm:$0xff]
  %v38 = vld [vmem:[%s1 + $0x38] sm:$0xff]
  %v39 = vld [vmem:[%s1 + $0x40] sm:$0xff]
  %v40 = vld [vmem:[%s1 + $0x48] sm:$0xff]
  %v41 = vld [vmem:[%s1 + $0x50] sm:$0xff]
  %v42 = vld [vmem:[%s1 + $0x58] sm:$0xff]
  %v43 = vld [vmem:[%s1 + $0x60] sm:$0xff]
  %v44 = vld [vmem:[%s1 + $0x68] sm:$0xff]
  %v45 = vld [vmem:[%s1 + $0x70] sm:$0xff]
  %v46 = vld [vmem:[%s1 + $0x78] sm:$0xff]
  %v47 = vld [vmem:[%s2] sm:$0xff]
  %v48 = vld [vmem:[%s2 + $0x8] sm:$0xff]
  %v49 = vld [vmem:[%s2 + $0x10] sm:$0xff]
  %v50 = vld [vmem:[%s2 + $0x18] sm:$0xff]
  %v51 = vld [vmem:[%s2 + $0x20] sm:$0xff]
  %v52 = vld [vmem:[%s2 + $0x28] sm:$0xff]
  %v53 = vld [vmem:[%s2 + $0x30] sm:$0xff]
  %v54 = vld [vmem:[%s2 + $0x38] sm:$0xff]
  %v55 = vld [vmem:[%s2 + $0x40] sm:$0xff]
  %v56 = vld [vmem:[%s2 + $0x48] sm:$0xff]
  %v57 = vld [vmem:[%s2 + $0x50] sm:$0xff]
  %v58 = vld [vmem:[%s2 + $0x58] sm:$0xff]
  %v59 = vld [vmem:[%s2 + $0x60] sm:$0xff]
  %v60 = vld [vmem:[%s2 + $0x68] sm:$0xff]
  %v61 = vld [vmem:[%s2 + $0x70] sm:$0xff]
  %v62 = vld [vmem:[%s2 + $0x78] sm:$0xff]
  %64 = vset.pattern.permute.xlu0 0
  %65 = vperm.xlu0 %64, %v47
  %v66 = vpop.permute.xlu0 %65
  %69 = vset.pattern.permute.xlu0 0
  %70 = vperm.xlu0 %69, %v48
  %v71 = vpop.permute.xlu0 %70
  %74 = vset.pattern.permute.xlu0 0
  %75 = vperm.xlu0 %74, %v49
  %v76 = vpop.permute.xlu0 %75
  %79 = vset.pattern.permute.xlu0 0
  %80 = vperm.xlu0 %79, %v50
  %v81 = vpop.permute.xlu0 %80
  %84 = vset.pattern.permute.xlu0 0
  %85 = vperm.xlu0 %84, %v51
  %v86 = vpop.permute.xlu0 %85
  %89 = vset.pattern.permute.xlu0 0
  %90 = vperm.xlu0 %89, %v52
  %v91 = vpop.permute.xlu0 %90
  %94 = vset.pattern.permute.xlu0 0
  %95 = vperm.xlu0 %94, %v53
  %v96 = vpop.permute.xlu0 %95
  %99 = vset.pattern.permute.xlu0 0
  %100 = vperm.xlu0 %99, %v54
  %v101 = vpop.permute.xlu0 %100
  %104 = vset.pattern.permute.xlu0 0
  %105 = vperm.xlu0 %104, %v55
  %v106 = vpop.permute.xlu0 %105
  %109 = vset.pattern.permute.xlu0 0
  %110 = vperm.xlu0 %109, %v56
  %v111 = vpop.permute.xlu0 %110
  %114 = vset.pattern.permute.xlu0 0
  %115 = vperm.xlu0 %114, %v57
  %v116 = vpop.permute.xlu0 %115
  %119 = vset.pattern.permute.xlu0 0
  %120 = vperm.xlu0 %119, %v58
  %v121 = vpop.permute.xlu0 %120
  %124 = vset.pattern.permute.xlu0 0
  %125 = vperm.xlu0 %124, %v59
  %v126 = vpop.permute.xlu0 %125
  %129 = vset.pattern.permute.xlu0 0
  %130 = vperm.xlu0 %129, %v60
  %v131 = vpop.permute.xlu0 %130
  %134 = vset.pattern.permute.xlu0 0
  %135 = vperm.xlu0 %134, %v61
  %v136 = vpop.permute.xlu0 %135
  %139 = vset.pattern.permute.xlu0 0
  %140 = vperm.xlu0 %139, %v62
  %v141 = vpop.permute.xlu0 %140
  %vm143 = vcmask 261120
  %v145 = vsel %vm143, %v31, 0
  %v148 = vsel %vm143, %v32, 0
  %v151 = vsel %vm143, %v33, 0
  %v154 = vsel %vm143, %v34, 0
  %v157 = vsel %vm143, %v35, 0
  %v160 = vsel %vm143, %v36, 0
  %v163 = vsel %vm143, %v37, 0
  %v166 = vsel %vm143, %v38, 0
  %v169 = vsel %vm143, %v39, 0
  %v172 = vsel %vm143, %v40, 0
  %v175 = vsel %vm143, %v41, 0
  %v178 = vsel %vm143, %v42, 0
  %v181 = vsel %vm143, %v43, 0
  %v184 = vsel %vm143, %v44, 0
  %v187 = vsel %vm143, %v45, 0
  %v190 = vsel %vm143, %v46, 0
  %192 = vmatprep.subr.mxu0 0.0
  %193 = vmatpush1.msra.mxu0 %v27
  %194 = vmatprep.subr.mxu0 0.0
  %195 = vmatpush1.msra.mxu0 %v28
  %196 = vmatprep.subr.mxu0 0.0
  %197 = vmatpush1.msra.mxu0 %v29
  %198 = vmatprep.subr.mxu0 0.0
  %199 = vmatpush1.msra.mxu0 %v30
  %200 = vmatprep.subr.mxu0 0.0
  %201 = vmatpush1.msra.mxu0 0.0
  %202 = vmatprep.subr.mxu0 0.0
  %203 = vmatpush1.msra.mxu0 0.0
  %204 = vmatprep.subr.mxu0 0.0
  %205 = vmatpush1.msra.mxu0 0.0
  %206 = vmatprep.subr.mxu0 0.0
  %207 = vmatpush1.msra.mxu0 0.0
  %208 = vmatprep.subr.mxu0 0.0
  %209 = vmatpush1.msra.mxu0 0.0
  %210 = vmatprep.subr.mxu0 0.0
  %211 = vmatpush1.msra.mxu0 0.0
  %212 = vmatprep.subr.mxu0 0.0
  %213 = vmatpush1.msra.mxu0 0.0
  %214 = vmatprep.subr.mxu0 0.0
  %215 = vmatpush1.msra.mxu0 0.0
  %216 = vmatprep.subr.mxu0 0.0
  %217 = vmatpush1.msra.mxu0 0.0
  %218 = vmatprep.subr.mxu0 0.0
  %219 = vmatpush1.msra.mxu0 0.0
  %220 = vmatprep.subr.mxu0 0.0
  %221 = vmatpush1.msra.mxu0 0.0
  %222 = vmatprep.subr.mxu0 0.0
  %223 = vmatpush1.msra.mxu0 0.0
  %224 = vmatprep.subr.mxu0 0.0
  %225 = vmatpush1.msra.mxu0 0.0
  %226 = vmatprep.subr.mxu0 0.0
  %227 = vmatpush1.msra.mxu0 0.0
  %228 = vmatprep.subr.mxu0 0.0
  %229 = vmatpush1.msra.mxu0 0.0
  %230 = vmatprep.subr.mxu0 0.0
  %231 = vmatpush1.msra.mxu0 0.0
  %232 = vmatprep.subr.mxu0 0.0
  %233 = vmatpush1.msra.mxu0 0.0
  %234 = vmatprep.subr.mxu0 0.0
  %235 = vmatpush1.msra.mxu0 0.0
  %236 = vmatprep.subr.mxu0 0.0
  %237 = vmatpush1.msra.mxu0 0.0
  %238 = vmatprep.subr.mxu0 0.0
  %239 = vmatpush1.msra.mxu0 0.0
  %240 = vmatprep.subr.mxu0 0.0
  %241 = vmatpush1.msra.mxu0 0.0
  %242 = vmatprep.subr.mxu0 0.0
  %243 = vmatpush1.msra.mxu0 0.0
  %244 = vmatprep.subr.mxu0 0.0
  %245 = vmatpush1.msra.mxu0 0.0
  %246 = vmatprep.subr.mxu0 0.0
  %247 = vmatpush1.msra.mxu0 0.0
  %248 = vmatprep.subr.mxu0 0.0
  %249 = vmatpush1.msra.mxu0 0.0
  %250 = vmatprep.subr.mxu0 0.0
  %251 = vmatpush1.msra.mxu0 0.0
  %252 = vmatprep.subr.mxu0 0.0
  %253 = vmatpush1.msra.mxu0 0.0
  %254 = vmatprep.subr.mxu0 0.0
  %255 = vmatpush1.msra.mxu0 0.0
  %256 = vmatprep.mubr.f32.mxu0 0.0
  %257 = vmatmul.mubr.f32.gmra.mrb[0].mxu0 %v145
  %v258 = vpop.f32.mrb[0].mxu0
  %v259 = vadd.f32 %v66, %v258
  %v260 = vpop.f32.mrb[0].mxu0
  %261 = vmatprep.mubr.f32.mxu0 0.0
  %262 = vmatmul.mubr.f32.gmra.mrb[0].mxu0 %v148
  %v263 = vpop.f32.mrb[0].mxu0
  %v264 = vadd.f32 %v71, %v263
  %v265 = vpop.f32.mrb[0].mxu0
  %266 = vmatprep.mubr.f32.mxu0 0.0
  %267 = vmatmul.mubr.f32.gmra.mrb[0].mxu0 %v151
  %v268 = vpop.f32.mrb[0].mxu0
  %v269 = vadd.f32 %v76, %v268
  %v270 = vpop.f32.mrb[0].mxu0
  %271 = vmatprep.mubr.f32.mxu0 0.0
  %272 = vmatmul.mubr.f32.gmra.mrb[0].mxu0 %v154
  %v273 = vpop.f32.mrb[0].mxu0
  %v274 = vadd.f32 %v81, %v273
  %v275 = vpop.f32.mrb[0].mxu0
  %276 = vmatprep.mubr.f32.mxu0 0.0
  %277 = vmatmul.mubr.f32.gmra.mrb[0].mxu0 %v157
  %v278 = vpop.f32.mrb[0].mxu0
  %v279 = vadd.f32 %v86, %v278
  %v280 = vpop.f32.mrb[0].mxu0
  %281 = vmatprep.mubr.f32.mxu0 0.0
  %282 = vmatmul.mubr.f32.gmra.mrb[0].mxu0 %v160
  %v283 = vpop.f32.mrb[0].mxu0
  %v284 = vadd.f32 %v91, %v283
  %v285 = vpop.f32.mrb[0].mxu0
  %286 = vmatprep.mubr.f32.mxu0 0.0
  %287 = vmatmul.mubr.f32.gmra.mrb[0].mxu0 %v163
  %v288 = vpop.f32.mrb[0].mxu0
  %v289 = vadd.f32 %v96, %v288
  %v290 = vpop.f32.mrb[0].mxu0
  %291 = vmatprep.mubr.f32.mxu0 0.0
  %292 = vmatmul.mubr.f32.gmra.mrb[0].mxu0 %v166
  %v293 = vpop.f32.mrb[0].mxu0
  %v294 = vadd.f32 %v101, %v293
  %v295 = vpop.f32.mrb[0].mxu0
  %296 = vmatprep.mubr.f32.mxu0 0.0
  %297 = vmatmul.mubr.f32.gmra.mrb[0].mxu0 %v169
  %v298 = vpop.f32.mrb[0].mxu0
  %v299 = vadd.f32 %v106, %v298
  %v300 = vpop.f32.mrb[0].mxu0
  %301 = vmatprep.mubr.f32.mxu0 0.0
  %302 = vmatmul.mubr.f32.gmra.mrb[0].mxu0 %v172
  %v303 = vpop.f32.mrb[0].mxu0
  %v304 = vadd.f32 %v111, %v303
  %v305 = vpop.f32.mrb[0].mxu0
  %306 = vmatprep.mubr.f32.mxu0 0.0
  %307 = vmatmul.mubr.f32.gmra.mrb[0].mxu0 %v175
  %v308 = vpop.f32.mrb[0].mxu0
  %v309 = vadd.f32 %v116, %v308
  %v310 = vpop.f32.mrb[0].mxu0
  %311 = vmatprep.mubr.f32.mxu0 0.0
  %312 = vmatmul.mubr.f32.gmra.mrb[0].mxu0 %v178
  %v313 = vpop.f32.mrb[0].mxu0
  %v314 = vadd.f32 %v121, %v313
  %v315 = vpop.f32.mrb[0].mxu0
  %316 = vmatprep.mubr.f32.mxu0 0.0
  %317 = vmatmul.mubr.f32.gmra.mrb[0].mxu0 %v181
  %v318 = vpop.f32.mrb[0].mxu0
  %v319 = vadd.f32 %v126, %v318
  %v320 = vpop.f32.mrb[0].mxu0
  %321 = vmatprep.mubr.f32.mxu0 0.0
  %322 = vmatmul.mubr.f32.gmra.mrb[0].mxu0 %v184
  %v323 = vpop.f32.mrb[0].mxu0
  %v324 = vadd.f32 %v131, %v323
  %v325 = vpop.f32.mrb[0].mxu0
  %326 = vmatprep.mubr.f32.mxu0 0.0
  %327 = vmatmul.mubr.f32.gmra.mrb[0].mxu0 %v187
  %v328 = vpop.f32.mrb[0].mxu0
  %v329 = vadd.f32 %v136, %v328
  %v330 = vpop.f32.mrb[0].mxu0
  %331 = vmatprep.mubr.f32.mxu0 0.0
  %332 = vmatmul.mubr.f32.gmra.mrb[0].mxu0 %v190
  %v333 = vpop.f32.mrb[0].mxu0
  %v334 = vadd.f32 %v141, %v333
  %v335 = vpop.f32.mrb[0].mxu0
  %336 = vdwg.mxu0
  %v337 = vmax.f32 %v259, 0.0
  %v338 = vmax.f32 %v264, 0.0
  %v339 = vmax.f32 %v269, 0.0
  %v340 = vmax.f32 %v274, 0.0
  %v341 = vmax.f32 %v279, 0.0
  %v342 = vmax.f32 %v284, 0.0
  %v343 = vmax.f32 %v289, 0.0
  %v344 = vmax.f32 %v294, 0.0
  %v345 = vmax.f32 %v299, 0.0
  %v346 = vmax.f32 %v304, 0.0
  %v347 = vmax.f32 %v309, 0.0
  %v348 = vmax.f32 %v314, 0.0
  %v349 = vmax.f32 %v319, 0.0
  %v350 = vmax.f32 %v324, 0.0
  %v351 = vmax.f32 %v329, 0.0
  %v352 = vmax.f32 %v334, 0.0
  %v353 = vld [vmem:[%s3] sm:$0xff]
  %v354 = vld [vmem:[%s3 + $0x8] sm:$0xff]
  %v355 = vld [vmem:[%s3 + $0x10] sm:$0xff]
  %v356 = vld [vmem:[%s3 + $0x18] sm:$0xff]
  %v357 = vld [vmem:[%s3 + $0x20] sm:$0xff]
  %v358 = vld [vmem:[%s3 + $0x28] sm:$0xff]
  %v359 = vld [vmem:[%s3 + $0x30] sm:$0xff]
  %v360 = vld [vmem:[%s3 + $0x38] sm:$0xff]
  %v361 = vld [vmem:[%s3 + $0x40] sm:$0xff]
  %v362 = vld [vmem:[%s3 + $0x48] sm:$0xff]
  %v363 = vld [vmem:[%s3 + $0x50] sm:$0xff]
  %v364 = vld [vmem:[%s3 + $0x58] sm:$0xff]
  %v365 = vld [vmem:[%s3 + $0x60] sm:$0xff]
  %v366 = vld [vmem:[%s3 + $0x68] sm:$0xff]
  %v367 = vld [vmem:[%s3 + $0x70] sm:$0xff]
  %v368 = vld [vmem:[%s3 + $0x78] sm:$0xff]
  %v369 = vld [vmem:[%s4] sm:$0xff]
  %v370 = vld [vmem:[%s4 + $0x8] sm:$0xff]
  %v371 = vld [vmem:[%s4 + $0x10] sm:$0xff]
  %v372 = vld [vmem:[%s4 + $0x18] sm:$0xff]
  %v373 = vld [vmem:[%s4 + $0x20] sm:$0xff]
  %v374 = vld [vmem:[%s4 + $0x28] sm:$0xff]
  %v375 = vld [vmem:[%s4 + $0x30] sm:$0xff]
  %v376 = vld [vmem:[%s4 + $0x38] sm:$0xff]
  %v377 = vld [vmem:[%s4 + $0x40] sm:$0xff]
  %v378 = vld [vmem:[%s4 + $0x48] sm:$0xff]
  %v379 = vld [vmem:[%s4 + $0x50] sm:$0xff]
  %v380 = vld [vmem:[%s4 + $0x58] sm:$0xff]
  %v381 = vld [vmem:[%s4 + $0x60] sm:$0xff]
  %v382 = vld [vmem:[%s4 + $0x68] sm:$0xff]
  %v383 = vld [vmem:[%s4 + $0x70] sm:$0xff]
  %v384 = vld [vmem:[%s4 + $0x78] sm:$0xff]
  %386 = vset.pattern.permute.xlu0 0
  %387 = vperm.xlu0 %386, %v369
  %v388 = vpop.permute.xlu0 %387
  %391 = vset.pattern.permute.xlu0 0
  %392 = vperm.xlu0 %391, %v370
  %v393 = vpop.permute.xlu0 %392
  %396 = vset.pattern.permute.xlu0 0
  %397 = vperm.xlu0 %396, %v371
  %v398 = vpop.permute.xlu0 %397
  %401 = vset.pattern.permute.xlu0 0
  %402 = vperm.xlu0 %401, %v372
  %v403 = vpop.permute.xlu0 %402
  %406 = vset.pattern.permute.xlu0 0
  %407 = vperm.xlu0 %406, %v373
  %v408 = vpop.permute.xlu0 %407
  %411 = vset.pattern.permute.xlu0 0
  %412 = vperm.xlu0 %411, %v374
  %v413 = vpop.permute.xlu0 %412
  %416 = vset.pattern.permute.xlu0 0
  %417 = vperm.xlu0 %416, %v375
  %v418 = vpop.permute.xlu0 %417
  %421 = vset.pattern.permute.xlu0 0
  %422 = vperm.xlu0 %421, %v376
  %v423 = vpop.permute.xlu0 %422
  %426 = vset.pattern.permute.xlu0 0
  %427 = vperm.xlu0 %426, %v377
  %v428 = vpop.permute.xlu0 %427
  %431 = vset.pattern.permute.xlu0 0
  %432 = vperm.xlu0 %431, %v378
  %v433 = vpop.permute.xlu0 %432
  %436 = vset.pattern.permute.xlu0 0
  %437 = vperm.xlu0 %436, %v379
  %v438 = vpop.permute.xlu0 %437
  %441 = vset.pattern.permute.xlu0 0
  %442 = vperm.xlu0 %441, %v380
  %v443 = vpop.permute.xlu0 %442
  %446 = vset.pattern.permute.xlu0 0
  %447 = vperm.xlu0 %446, %v381
  %v448 = vpop.permute.xlu0 %447
  %451 = vset.pattern.permute.xlu0 0
  %452 = vperm.xlu0 %451, %v382
  %v453 = vpop.permute.xlu0 %452
  %456 = vset.pattern.permute.xlu0 0
  %457 = vperm.xlu0 %456, %v383
  %v458 = vpop.permute.xlu0 %457
  %461 = vset.pattern.permute.xlu0 0
  %462 = vperm.xlu0 %461, %v384
  %v463 = vpop.permute.xlu0 %462
  %465 = vmatprep.subr.mxu0 0.0
  %466 = vmatpush1.msra.mxu0 %v337
  %467 = vmatprep.subr.mxu0 0.0
  %468 = vmatpush1.msra.mxu0 %v338
  %469 = vmatprep.subr.mxu0 0.0
  %470 = vmatpush1.msra.mxu0 %v339
  %471 = vmatprep.subr.mxu0 0.0
  %472 = vmatpush1.msra.mxu0 %v340
  %473 = vmatprep.subr.mxu0 0.0
  %474 = vmatpush1.msra.mxu0 %v341
  %475 = vmatprep.subr.mxu0 0.0
  %476 = vmatpush1.msra.mxu0 %v342
  %477 = vmatprep.subr.mxu0 0.0
  %478 = vmatpush1.msra.mxu0 %v343
  %479 = vmatprep.subr.mxu0 0.0
  %480 = vmatpush1.msra.mxu0 %v344
  %481 = vmatprep.subr.mxu0 0.0
  %482 = vmatpush1.msra.mxu0 %v345
  %483 = vmatprep.subr.mxu0 0.0
  %484 = vmatpush1.msra.mxu0 %v346
  %485 = vmatprep.subr.mxu0 0.0
  %486 = vmatpush1.msra.mxu0 %v347
  %487 = vmatprep.subr.mxu0 0.0
  %488 = vmatpush1.msra.mxu0 %v348
  %489 = vmatprep.subr.mxu0 0.0
  %490 = vmatpush1.msra.mxu0 %v349
  %491 = vmatprep.subr.mxu0 0.0
  %492 = vmatpush1.msra.mxu0 %v350
  %493 = vmatprep.subr.mxu0 0.0
  %494 = vmatpush1.msra.mxu0 %v351
  %495 = vmatprep.subr.mxu0 0.0
  %496 = vmatpush1.msra.mxu0 %v352
  %497 = vmatprep.subr.mxu0 0.0
  %498 = vmatpush1.msra.mxu0 0.0
  %499 = vmatprep.subr.mxu0 0.0
  %500 = vmatpush1.msra.mxu0 0.0
  %501 = vmatprep.subr.mxu0 0.0
  %502 = vmatpush1.msra.mxu0 0.0
  %503 = vmatprep.subr.mxu0 0.0
  %504 = vmatpush1.msra.mxu0 0.0
  %505 = vmatprep.subr.mxu0 0.0
  %506 = vmatpush1.msra.mxu0 0.0
  %507 = vmatprep.subr.mxu0 0.0
  %508 = vmatpush1.msra.mxu0 0.0
  %509 = vmatprep.subr.mxu0 0.0
  %510 = vmatpush1.msra.mxu0 0.0
  %511 = vmatprep.subr.mxu0 0.0
  %512 = vmatpush1.msra.mxu0 0.0
  %513 = vmatprep.subr.mxu0 0.0
  %514 = vmatpush1.msra.mxu0 0.0
  %515 = vmatprep.subr.mxu0 0.0
  %516 = vmatpush1.msra.mxu0 0.0
  %517 = vmatprep.subr.mxu0 0.0
  %518 = vmatpush1.msra.mxu0 0.0
  %519 = vmatprep.subr.mxu0 0.0
  %520 = vmatpush1.msra.mxu0 0.0
  %521 = vmatprep.subr.mxu0 0.0
  %522 = vmatpush1.msra.mxu0 0.0
  %523 = vmatprep.subr.mxu0 0.0
  %524 = vmatpush1.msra.mxu0 0.0
  %525 = vmatprep.subr.mxu0 0.0
  %526 = vmatpush1.msra.mxu0 0.0
  %527 = vmatprep.subr.mxu0 0.0
  %528 = vmatpush1.msra.mxu0 0.0
  %529 = vmatprep.mubr.f32.mxu0 0.0
  %530 = vmatmul.mubr.f32.gmra.mrb[0].mxu0 %v353
  %v531 = vpop.f32.mrb[0].mxu0
  %v532 = vadd.f32 %v388, %v531
  %v533 = vpop.f32.mrb[0].mxu0
  %534 = vmatprep.mubr.f32.mxu0 0.0
  %535 = vmatmul.mubr.f32.gmra.mrb[0].mxu0 %v354
  %v536 = vpop.f32.mrb[0].mxu0
  %v537 = vadd.f32 %v393, %v536
  %v538 = vpop.f32.mrb[0].mxu0
  %539 = vmatprep.mubr.f32.mxu0 0.0
  %540 = vmatmul.mubr.f32.gmra.mrb[0].mxu0 %v355
  %v541 = vpop.f32.mrb[0].mxu0
  %v542 = vadd.f32 %v398, %v541
  %v543 = vpop.f32.mrb[0].mxu0
  %544 = vmatprep.mubr.f32.mxu0 0.0
  %545 = vmatmul.mubr.f32.gmra.mrb[0].mxu0 %v356
  %v546 = vpop.f32.mrb[0].mxu0
  %v547 = vadd.f32 %v403, %v546
  %v548 = vpop.f32.mrb[0].mxu0
  %549 = vmatprep.mubr.f32.mxu0 0.0
  %550 = vmatmul.mubr.f32.gmra.mrb[0].mxu0 %v357
  %v551 = vpop.f32.mrb[0].mxu0
  %v552 = vadd.f32 %v408, %v551
  %v553 = vpop.f32.mrb[0].mxu0
  %554 = vmatprep.mubr.f32.mxu0 0.0
  %555 = vmatmul.mubr.f32.gmra.mrb[0].mxu0 %v358
  %v556 = vpop.f32.mrb[0].mxu0
  %v557 = vadd.f32 %v413, %v556
  %v558 = vpop.f32.mrb[0].mxu0
  %559 = vmatprep.mubr.f32.mxu0 0.0
  %560 = vmatmul.mubr.f32.gmra.mrb[0].mxu0 %v359
  %v561 = vpop.f32.mrb[0].mxu0
  %v562 = vadd.f32 %v418, %v561
  %v563 = vpop.f32.mrb[0].mxu0
  %564 = vmatprep.mubr.f32.mxu0 0.0
  %565 = vmatmul.mubr.f32.gmra.mrb[0].mxu0 %v360
  %v566 = vpop.f32.mrb[0].mxu0
  %v567 = vadd.f32 %v423, %v566
  %v568 = vpop.f32.mrb[0].mxu0
  %569 = vmatprep.mubr.f32.mxu0 0.0
  %570 = vmatmul.mubr.f32.gmra.mrb[0].mxu0 %v361
  %v571 = vpop.f32.mrb[0].mxu0
  %v572 = vadd.f32 %v428, %v571
  %v573 = vpop.f32.mrb[0].mxu0
  %574 = vmatprep.mubr.f32.mxu0 0.0
  %575 = vmatmul.mubr.f32.gmra.mrb[0].mxu0 %v362
  %v576 = vpop.f32.mrb[0].mxu0
  %v577 = vadd.f32 %v433, %v576
  %v578 = vpop.f32.mrb[0].mxu0
  %579 = vmatprep.mubr.f32.mxu0 0.0
  %580 = vmatmul.mubr.f32.gmra.mrb[0].mxu0 %v363
  %v581 = vpop.f32.mrb[0].mxu0
  %v582 = vadd.f32 %v438, %v581
  %v583 = vpop.f32.mrb[0].mxu0
  %584 = vmatprep.mubr.f32.mxu0 0.0
  %585 = vmatmul.mubr.f32.gmra.mrb[0].mxu0 %v364
  %v586 = vpop.f32.mrb[0].mxu0
  %v587 = vadd.f32 %v443, %v586
  %v588 = vpop.f32.mrb[0].mxu0
  %589 = vmatprep.mubr.f32.mxu0 0.0
  %590 = vmatmul.mubr.f32.gmra.mrb[0].mxu0 %v365
  %v591 = vpop.f32.mrb[0].mxu0
  %v592 = vadd.f32 %v448, %v591
  %v593 = vpop.f32.mrb[0].mxu0
  %594 = vmatprep.mubr.f32.mxu0 0.0
  %595 = vmatmul.mubr.f32.gmra.mrb[0].mxu0 %v366
  %v596 = vpop.f32.mrb[0].mxu0
  %v597 = vadd.f32 %v453, %v596
  %v598 = vpop.f32.mrb[0].mxu0
  %599 = vmatprep.mubr.f32.mxu0 0.0
  %600 = vmatmul.mubr.f32.gmra.mrb[0].mxu0 %v367
  %v601 = vpop.f32.mrb[0].mxu0
  %v602 = vadd.f32 %v458, %v601
  %v603 = vpop.f32.mrb[0].mxu0
  %604 = vmatprep.mubr.f32.mxu0 0.0
  %605 = vmatmul.mubr.f32.gmra.mrb[0].mxu0 %v368
  %v606 = vpop.f32.mrb[0].mxu0
  %v607 = vadd.f32 %v463, %v606
  %v608 = vpop.f32.mrb[0].mxu0
  %609 = vdwg.mxu0
  %v610 = vmax.f32 %v532, 0.0
  %v611 = vmax.f32 %v537, 0.0
  %v612 = vmax.f32 %v542, 0.0
  %v613 = vmax.f32 %v547, 0.0
  %v614 = vmax.f32 %v552, 0.0
  %v615 = vmax.f32 %v557, 0.0
  %v616 = vmax.f32 %v562, 0.0
  %v617 = vmax.f32 %v567, 0.0
  %v618 = vmax.f32 %v572, 0.0
  %v619 = vmax.f32 %v577, 0.0
  %v620 = vmax.f32 %v582, 0.0
  %v621 = vmax.f32 %v587, 0.0
  %v622 = vmax.f32 %v592, 0.0
  %v623 = vmax.f32 %v597, 0.0
  %v624 = vmax.f32 %v602, 0.0
  %v625 = vmax.f32 %v607, 0.0
  %v626 = vld [vmem:[%s5] sm:$0xff]
  %v627 = vld [vmem:[%s5 + $0x8] sm:$0xff]
  %v628 = vld [vmem:[%s5 + $0x10] sm:$0xff]
  %v629 = vld [vmem:[%s5 + $0x18] sm:$0xff]
  %v630 = vld [vmem:[%s5 + $0x20] sm:$0xff]
  %v631 = vld [vmem:[%s5 + $0x28] sm:$0xff]
  %v632 = vld [vmem:[%s5 + $0x30] sm:$0xff]
  %v633 = vld [vmem:[%s5 + $0x38] sm:$0xff]
  %v634 = vld [vmem:[%s5 + $0x40] sm:$0xff]
  %v635 = vld [vmem:[%s5 + $0x48] sm:$0xff]
  %v636 = vld [vmem:[%s5 + $0x50] sm:$0xff]
  %v637 = vld [vmem:[%s5 + $0x58] sm:$0xff]
  %v638 = vld [vmem:[%s5 + $0x60] sm:$0xff]
  %v639 = vld [vmem:[%s5 + $0x68] sm:$0xff]
  %v640 = vld [vmem:[%s5 + $0x70] sm:$0xff]
  %v641 = vld [vmem:[%s5 + $0x78] sm:$0xff]
  %643 = vset.pattern.permute.xlu0 0
  %644 = vperm.xlu0 %643, %v626
  %v645 = vpop.permute.xlu0 %644
  %648 = vset.pattern.permute.xlu0 0
  %649 = vperm.xlu0 %648, %v627
  %v650 = vpop.permute.xlu0 %649
  %653 = vset.pattern.permute.xlu0 0
  %654 = vperm.xlu0 %653, %v628
  %v655 = vpop.permute.xlu0 %654
  %658 = vset.pattern.permute.xlu0 0
  %659 = vperm.xlu0 %658, %v629
  %v660 = vpop.permute.xlu0 %659
  %663 = vset.pattern.permute.xlu0 0
  %664 = vperm.xlu0 %663, %v630
  %v665 = vpop.permute.xlu0 %664
  %668 = vset.pattern.permute.xlu0 0
  %669 = vperm.xlu0 %668, %v631
  %v670 = vpop.permute.xlu0 %669
  %673 = vset.pattern.permute.xlu0 0
  %674 = vperm.xlu0 %673, %v632
  %v675 = vpop.permute.xlu0 %674
  %678 = vset.pattern.permute.xlu0 0
  %679 = vperm.xlu0 %678, %v633
  %v680 = vpop.permute.xlu0 %679
  %683 = vset.pattern.permute.xlu0 0
  %684 = vperm.xlu0 %683, %v634
  %v685 = vpop.permute.xlu0 %684
  %688 = vset.pattern.permute.xlu0 0
  %689 = vperm.xlu0 %688, %v635
  %v690 = vpop.permute.xlu0 %689
  %693 = vset.pattern.permute.xlu0 0
  %694 = vperm.xlu0 %693, %v636
  %v695 = vpop.permute.xlu0 %694
  %698 = vset.pattern.permute.xlu0 0
  %699 = vperm.xlu0 %698, %v637
  %v700 = vpop.permute.xlu0 %699
  %703 = vset.pattern.permute.xlu0 0
  %704 = vperm.xlu0 %703, %v638
  %v705 = vpop.permute.xlu0 %704
  %708 = vset.pattern.permute.xlu0 0
  %709 = vperm.xlu0 %708, %v639
  %v710 = vpop.permute.xlu0 %709
  %713 = vset.pattern.permute.xlu0 0
  %714 = vperm.xlu0 %713, %v640
  %v715 = vpop.permute.xlu0 %714
  %718 = vset.pattern.permute.xlu0 0
  %719 = vperm.xlu0 %718, %v641
  %v720 = vpop.permute.xlu0 %719
  %v722 = vmul.f32 %v610, %v645
  %v723 = vmul.f32 %v611, %v650
  %v724 = vmul.f32 %v612, %v655
  %v725 = vmul.f32 %v613, %v660
  %v726 = vmul.f32 %v614, %v665
  %v727 = vmul.f32 %v615, %v670
  %v728 = vmul.f32 %v616, %v675
  %v729 = vmul.f32 %v617, %v680
  %v730 = vmul.f32 %v618, %v685
  %v731 = vmul.f32 %v619, %v690
  %v732 = vmul.f32 %v620, %v695
  %v733 = vmul.f32 %v621, %v700
  %v734 = vmul.f32 %v622, %v705
  %v735 = vmul.f32 %v623, %v710
  %v736 = vmul.f32 %v624, %v715
  %v737 = vmul.f32 %v625, %v720
  %v738 = vadd.f32 %v722, %v723
  %v739 = vadd.f32 %v738, %v724
  %v740 = vadd.f32 %v739, %v725
  %v741 = vadd.f32 %v740, %v726
  %v742 = vadd.f32 %v741, %v727
  %v743 = vadd.f32 %v742, %v728
  %v744 = vadd.f32 %v743, %v729
  %v745 = vadd.f32 %v744, %v730
  %v746 = vadd.f32 %v745, %v731
  %v747 = vadd.f32 %v746, %v732
  %v748 = vadd.f32 %v747, %v733
  %v749 = vadd.f32 %v748, %v734
  %v750 = vadd.f32 %v749, %v735
  %v751 = vadd.f32 %v750, %v736
  %v752 = vadd.f32 %v751, %v737
  %v753 = vrot.slane %v752, 4
  %v754 = vadd.f32 %v752, %v753
  %v755 = vrot.slane %v754, 2
  %v756 = vadd.f32 %v754, %v755
  %v757 = vrot.slane %v756, 1
  %v758 = vadd.f32 %v756, %v757
  %s759 = sld [smem:[#allocation2]]
  %v760 = vstv %s759
  %v761 = vadd.f32 %v758, %v760
  %762 = vst [vmem:[%s7] sm:$0x1] %v761
  // Predicated region
  $region30: #{value_forward.1} parent=0 // pred_check
    _
  $region31: #{value_forward.1} parent=0 // pred_check_branch
    %764 = sbr.rel (0) target = $region33
  $region32: #{value_forward.1} parent=0 // pred_region
    _
  $region33: #{value_forward.1} parent=0 // pred_fallthru
    _
  // Predicated region
  $region34: #{value_forward.1} parent=0 // pred_check
    _
  $region35: #{value_forward.1} parent=0 // pred_check_branch
    %766 = sbr.rel (0) target = $region37
  $region36: #{value_forward.1} parent=0 // pred_region
    _
  $region37: #{value_forward.1} parent=0 // pred_fallthru
    _

</llo_original>
